<compile_context>
chip_gen: v7x
topology: tpu7x:2x2x1
jax: 0.10.0
libtpu: 0.0.40
codegen_flags: <defaults>
</compile_context>

<pallas_src>
import jax
import jax.numpy as jnp
from jax.experimental import pallas as pl
from jax.experimental.pallas import tpu as pltpu


def _spectral_loss_kernel(w_ref, u_ref, z_ref, out_ref, acc_ref):
    j = pl.program_id(1)

    @pl.when(j == 0)
    def _():
        acc_ref[...] = jnp.zeros_like(acc_ref)

    # (tm, tn) @ (tn, k+2) on the MXU, f32 accumulation; all O(tm*tn) work
    # lives here, leaving the HBM stream over W as the only binding resource.
    acc_ref[...] += jnp.dot(w_ref[...], z_ref[...],
                            preferred_element_type=jnp.float32)

    @pl.when(j == pl.num_programs(1) - 1)
    def _():
        # per-row-block partial:  sum_i sum_c U[i,c] * (W @ Z)[i,c]
        out_ref[...] = jnp.sum(u_ref[...] * acc_ref[...]).reshape(1, 1, 1)


def _pick_tile(m: int, target: int, align: int) -> int:
    """Largest tile <= target that divides m and is `align`-aligned, else m."""
    if m <= target:
        return m
    t = (target // align) * align
    while t >= align:
        if m % t == 0:
            return t
        t -= align
    return m  # full extent is always a legal block size


def spectral_net_loss(W, Y, is_normalized: bool = False,
                      *, row_tile: int = 256, col_tile: int = 512):
    """JAX/Pallas equivalent of SpectralNetLoss.forward."""
    m, k = Y.shape
    W = W.astype(jnp.float32)
    Y = Y.astype(jnp.float32)

    if is_normalized:
        # degree normalization: cheap glue in plain JAX (matches torch,
        # including no guard against zero degree).
        D = jnp.sum(W, axis=1)
        Y = Y / jnp.sqrt(D)[:, None]

    # Hoisted once (not recomputed per grid step): ||Y||^2 and the augmented
    # operands of the U.Z = squared-distance identity.
    n = jnp.sum(Y * Y, axis=1, keepdims=True)            # (m, 1)
    ones = jnp.ones((m, 1), jnp.float32)
    Z = jnp.concatenate([Y, ones, n], axis=1)            # (m, k+2)
    U = jnp.concatenate([-2.0 * Y, n, ones], axis=1)     # (m, k+2)
    kc = k + 2

    tm = _pick_tile(m, row_tile, 8)      # sublane-aligned row tile
    tn = _pick_tile(m, col_tile, 128)    # lane-aligned column (reduction) tile
    num_i = m // tm
    num_j = m // tn

    partials = pl.pallas_call(
        _spectral_loss_kernel,
        out_shape=jax.ShapeDtypeStruct((num_i, 1, 1), jnp.float32),
        grid_spec=pltpu.PrefetchScalarGridSpec(
            num_scalar_prefetch=0,
            grid=(num_i, num_j),                              # reduction axis last
            in_specs=[
                pl.BlockSpec((tm, tn), lambda i, j: (i, j)),  # W tile (streamed)
                pl.BlockSpec((tm, kc), lambda i, j: (i, 0)),  # U rows (per row blk)
                pl.BlockSpec((tn, kc), lambda i, j: (j, 0)),  # Z rows (per col blk)
            ],
            out_specs=pl.BlockSpec((1, 1, 1), lambda i, j: (i, 0, 0)),
            scratch_shapes=[pltpu.VMEM((tm, kc), jnp.float32)],
        ),
        compiler_params=pltpu.CompilerParams(
            # rows are independent -> megacore-sharded on v7x; columns reduce.
            dimension_semantics=("parallel", "arbitrary"),
        ),
    )(W, U, Z)

    # Tiny epilogue: sum per-row-block partials (better accuracy than a single
    # in-kernel f32 scalar accumulator) and apply the 1/(2m) scaling.
    return jnp.sum(partials) / (2.0 * m)


def _reference_loss(W, Y, is_normalized=False):
    m = Y.shape[0]
    W = W.astype(jnp.float32)
    Y = Y.astype(jnp.float32)
    if is_normalized:
        D = jnp.sum(W, axis=1)
        Y = Y / jnp.sqrt(D)[:, None]
    d2 = jnp.sum((Y[:, None, :] - Y[None, :, :]) ** 2, axis=-1)
    return jnp.sum(W * d2) / (2 * m)


if __name__ == "__main__":
    key = jax.random.PRNGKey(0)

    def make_inputs(k1, m, k):
        kw, ky = jax.random.split(k1)
        A = jax.random.uniform(kw, (m, m), dtype=jnp.float32)
        Wm = 0.5 * (A + A.T)          # symmetric non-negative affinity matrix
        Ym = jax.random.normal(ky, (m, k), dtype=jnp.float32)
        return Wm, Ym

    k1, k2 = jax.random.split(key)

    # case 1: m=256, k=16, small tiles to force a 2x2 grid (exercises the
    # accumulator init/finalize and per-row-block partial outputs)
    W, Y = make_inputs(k1, 256, 16)
    loss = spectral_net_loss(W, Y, is_normalized=False,
                             row_tile=128, col_tile=128)
    jax.block_until_ready(loss)
    ref = _reference_loss(W, Y, is_normalized=False)
    assert jnp.allclose(loss, ref, rtol=1e-4, atol=1e-4), (loss, ref)

    # normalized-Laplacian branch, default tiles (single block)
    loss_n = spectral_net_loss(W, Y, is_normalized=True)
    jax.block_until_ready(loss_n)
    ref_n = _reference_loss(W, Y, is_normalized=True)
    assert jnp.allclose(loss_n, ref_n, rtol=1e-4, atol=1e-4), (loss_n, ref_n)

    # case 2: odd embedding dim, 3x3 grid
    W2, Y2 = make_inputs(k2, 384, 7)
    loss2 = spectral_net_loss(W2, Y2, row_tile=128, col_tile=128)
    jax.block_until_ready(loss2)
    ref2 = _reference_loss(W2, Y2)
    assert jnp.allclose(loss2, ref2, rtol=1e-4, atol=1e-4), (loss2, ref2)

    print("KERNEL_OK")
</pallas_src>

<mosaic_0001>
module attributes {stable_mosaic.version = 11 : i64} {
  func.func @_spectral_loss_kernel(%arg0: i32, %arg1: i32, %arg2: memref<128x128xf32, #tpu.memory_space<vmem>>, %arg3: memref<128x18xf32, #tpu.memory_space<vmem>>, %arg4: memref<128x18xf32, #tpu.memory_space<vmem>>, %arg5: memref<1x1x1xf32, #tpu.memory_space<vmem>>, %arg6: memref<128x18xf32, #tpu.memory_space<vmem>>) attributes {dimension_semantics = [#tpu.dimension_semantics<parallel>, #tpu.dimension_semantics<arbitrary>], iteration_bounds = array<i64: 2, 2>, scalar_prefetch = 0 : i64, scratch_operands = 1 : i64, tpu.core_type = #tpu.core_type<tc>, window_params = [{transform_indices = @transform_0, window_bounds = array<i64: 128, 128>}, {transform_indices = @transform_1, window_bounds = array<i64: 128, 18>}, {transform_indices = @transform_2, window_bounds = array<i64: 128, 18>}, {transform_indices = @transform_3, window_bounds = array<i64: 1, 1, 1>}]} {
    %c0_i32 = arith.constant 0 : i32
    %0 = arith.cmpi eq, %arg1, %c0_i32 : i32
    %1 = arith.extui %0 : i1 to i32
    %c0_i32_0 = arith.constant 0 : i32
    %2 = arith.cmpi ne, %1, %c0_i32_0 : i32
    scf.if %2 {
      %cst_9 = arith.constant 0.000000e+00 : f32
      %12 = vector.broadcast %cst_9 : f32 to vector<128x18xf32>
      %c0_10 = arith.constant 0 : index
      %c0_11 = arith.constant 0 : index
      %13 = vector.load %arg6[%c0_10, %c0_11] : memref<128x18xf32, #tpu.memory_space<vmem>>, vector<128x18xf32>
      tpu.vector_store %arg6[%c0_10, %c0_11], %12 {strides = array<i32>} : memref<128x18xf32, #tpu.memory_space<vmem>>, vector<128x18xf32>,
    } else {
    }
    %c0 = arith.constant 0 : index
    %c0_1 = arith.constant 0 : index
    %3 = vector.load %arg6[%c0, %c0_1] : memref<128x18xf32, #tpu.memory_space<vmem>>, vector<128x18xf32>
    %c0_2 = arith.constant 0 : index
    %c0_3 = arith.constant 0 : index
    %4 = vector.load %arg2[%c0_2, %c0_3] : memref<128x128xf32, #tpu.memory_space<vmem>>, vector<128x128xf32>
    %c0_4 = arith.constant 0 : index
    %c0_5 = arith.constant 0 : index
    %5 = vector.load %arg4[%c0_4, %c0_5] : memref<128x18xf32, #tpu.memory_space<vmem>>, vector<128x18xf32>
    %cst = arith.constant dense<0.000000e+00> : vector<128x18xf32>
    %6 = tpu.matmul %4, %5, %cst {dimension_numbers = #tpu.dot_dimension_numbers<[1], [0], [0], [1], [0, 0, 1, 1], [], []>} : vector<128x128xf32>, vector<128x18xf32>, vector<128x18xf32> -> vector<128x18xf32>
    %7 = arith.addf %3, %6 : vector<128x18xf32>
    %c0_6 = arith.constant 0 : index
    %c0_7 = arith.constant 0 : index
    %8 = vector.load %arg6[%c0_6, %c0_7] : memref<128x18xf32, #tpu.memory_space<vmem>>, vector<128x18xf32>
    tpu.vector_store %arg6[%c0_6, %c0_7], %7 {strides = array<i32>} : memref<128x18xf32, #tpu.memory_space<vmem>>, vector<128x18xf32>,
    %c1_i32 = arith.constant 1 : i32
    %9 = arith.cmpi eq, %arg1, %c1_i32 : i32
    %10 = arith.extui %9 : i1 to i32
    %c0_i32_8 = arith.constant 0 : i32
    %11 = arith.cmpi ne, %10, %c0_i32_8 : i32
    scf.if %11 {
      %c0_9 = arith.constant 0 : index
      %c0_10 = arith.constant 0 : index
      %12 = vector.load %arg3[%c0_9, %c0_10] : memref<128x18xf32, #tpu.memory_space<vmem>>, vector<128x18xf32>
      %c0_11 = arith.constant 0 : index
      %c0_12 = arith.constant 0 : index
      %13 = vector.load %arg6[%c0_11, %c0_12] : memref<128x18xf32, #tpu.memory_space<vmem>>, vector<128x18xf32>
      %14 = arith.mulf %12, %13 : vector<128x18xf32>
      %15 = vector.shape_cast %14 : vector<128x18xf32> to vector<1x128x18xf32>
      %cst_13 = arith.constant dense<0.000000e+00> : vector<1xf32>
      %16 = vector.multi_reduction <add>, %15, %cst_13 [1, 2] : vector<1x128x18xf32> to vector<1xf32>
      %17 = vector.shape_cast %16 : vector<1xf32> to vector<1x1x1xf32>
      %18 = vector.extract %17[0, 0, 0] : f32 from vector<1x1x1xf32>
      %19 = vector.broadcast %18 : f32 to vector<1x1x1xf32>
      %c0_14 = arith.constant 0 : index
      %c0_15 = arith.constant 0 : index
      %c0_16 = arith.constant 0 : index
      %20 = vector.load %arg5[%c0_14, %c0_15, %c0_16] : memref<1x1x1xf32, #tpu.memory_space<vmem>>, vector<1x1x1xf32>
      tpu.vector_store %arg5[%c0_14, %c0_15, %c0_16], %19 {strides = array<i32>} : memref<1x1x1xf32, #tpu.memory_space<vmem>>, vector<1x1x1xf32>,
    } else {
    }
    return
  }
  func.func @transform_0(%arg0: i32, %arg1: i32) -> (i32, i32) {
    %c0_i32 = arith.constant 0 : i32
    return %arg0, %arg1 : i32, i32
  }
  func.func @transform_1(%arg0: i32, %arg1: i32) -> (i32, i32) {
    %c0_i32 = arith.constant 0 : i32
    %c0_i32_0 = arith.constant 0 : i32
    return %arg0, %c0_i32 : i32, i32
  }
  func.func @transform_2(%arg0: i32, %arg1: i32) -> (i32, i32) {
    %c0_i32 = arith.constant 0 : i32
    %c0_i32_0 = arith.constant 0 : i32
    return %arg1, %c0_i32 : i32, i32
  }
  func.func @transform_3(%arg0: i32, %arg1: i32) -> (i32, i32, i32) {
    %c0_i32 = arith.constant 0 : i32
    %c0_i32_0 = arith.constant 0 : i32
    %c0_i32_1 = arith.constant 0 : i32
    return %arg0, %c0_i32, %c0_i32_0 : i32, i32, i32
  }
}

</mosaic_0001>

<llo_original>
// kernel: tpu_custom_call.1
$region0: #{tpu_custom_call.1}
  #allocation0 [shape = 'u32[]', space=smem, size = 0x4, offset = 0x4, fixed_abs, tag = 'smem constant byte address 0x4 - core index']
  #allocation1 [shape = 'u32[144,128]{1,0:T(1,128)}', space=vmem, size = 0x12000, scoped, tag = 'internal scratch']
  #allocation2 [shape = 'f32[128,18]{1,0:T(8,128)}', space=vmem, size = 0x10000, scoped, tag = 'scratch operand']
  %s0 = inlined_call_operand.vmem [shape: f32[256,256], index: 0, kind: input, shape index: {}]
  %s1 = inlined_call_operand.vmem [shape: f32[256,18], index: 1, kind: input, shape index: {}]
  %s2 = inlined_call_operand.vmem [shape: f32[256,18], index: 2, kind: input, shape index: {}]
  %s3 = inlined_call_operand.vmem [shape: f32[2,1,1], index: 3, kind: output, shape index: {}]
  %s4 = sld [smem:[#allocation0]]
  $region91: #{tpu_custom_call.1} parent=0
    _
  %s6 = ssub.s32 1, %s4
  %s7 = scalar_select 0, %s6, %s4
  $region1: #{tpu_custom_call.1} parent=0
    #allocation3 [shape = 'u8[131072]{0}', space=vmem, size = 0x20000, scoped, tag = 'input window, operand 0']
    loop: start=0, step=1, limit=6
    $region2: #{tpu_custom_call.1} parent=1 // loop_pre_header
      _
    $region3: #{tpu_custom_call.1} parent=1 // loop_header
      %s9 = sphi 0, %s13
      %p10 = scmp.ge.s32.totalorder %s9, 6
      %s16 = sphi 0, %s28
      %s17 = sphi 0, %s24
      %s18 = sphi 0, %s16
      %s19 = sphi 0, %s17
      %s20 = sphi 0, %s18
      %s21 = sphi 0, %s19
      %s33 = sphi 0, %s35
      %s36 = sphi 0, %s33
      %s37 = sphi 0, %s36
      %s53 = sphi 0, %s37
      %s59 = sphi 0, %s61
      %s62 = sphi 0, %s59
      %s63 = sphi 0, %s62
      %s79 = sphi 0, %s63
      %s85 = sphi 0, %s87
      %s88 = sphi 0, %s85
      %s89 = sphi 0, %s88
      %s105 = sphi 0, %s89
      %s111 = sphi 0, %s113
      %s114 = sphi 0, %s111
      %s115 = sphi 0, %s114
      %s131 = sphi 0, %s115
    $region4: #{tpu_custom_call.1} parent=1 // loop_header_branch
      %12 = sbr.rel (%p10) target = $region8
    $region5: #{tpu_custom_call.1} parent=1 // loop_body
      %s14 = ssub.s32 %s9, 1
      %s15 = ssub.s32 %s9, 2
      %s22 = sadd.s32 1, %s17
      %p23 = scmp.ge.s32.totalorder %s22, 2
      %s24 = scalar_select %p23, 0, %s22
      %s25 = sadd.s32 1, %s16
      %s26 = scalar_select %p23, %s25, %s16
      %p27 = scmp.ge.s32.totalorder %s26, 2
      %s28 = scalar_select %p27, 0, %s26
      %s29 = ssub.s32 %s16, %s28
      %s30 = ssub.s32 %s17, %s24
      %s31 = sor.u32 %s29, %s30
      %p32 = scmp.eq.s32.totalorder %s31, 0
      %s34 = sadd.s32 %s33, 1
      %s35 = scalar_select %p32, %s33, %s34
      %p38 = pneg %p32
      %p39 = scmp.eq.s32.totalorder %s9, 3
      %p40 = por %p38, %p39
      %p41 = scmp.ne.s32.totalorder %s33, %s36
      %p42 = scmp.eq.s32.totalorder %s9, 0
      %p43 = por %p41, %p42
      %p44 = scmp.ne.s32.totalorder %s33, %s36
      %p45 = scmp.eq.s32.totalorder %s14, 3
      %p46 = por %p44, %p45
      %p47 = scmp.ne.s32.totalorder %s36, %s37
      %p48 = scmp.eq.s32.totalorder %s14, 0
      %p49 = por %p47, %p48
      %p50 = scmp.ne.s32.totalorder %s36, %s37
      %p51 = scmp.eq.s32.totalorder %s15, 3
      %p52 = por %p50, %p51
      %p54 = scmp.ne.s32.totalorder %s37, %s53
      %p55 = scmp.eq.s32.totalorder %s15, 0
      %p56 = por %p54, %p55
      %s57 = ssub.s32 %s16, %s28
      %p58 = scmp.eq.s32.totalorder %s57, 0
      %s60 = sadd.s32 %s59, 1
      %s61 = scalar_select %p58, %s59, %s60
      %p64 = pneg %p58
      %p65 = scmp.eq.s32.totalorder %s9, 3
      %p66 = por %p64, %p65
      %p67 = scmp.ne.s32.totalorder %s59, %s62
      %p68 = scmp.eq.s32.totalorder %s9, 0
      %p69 = por %p67, %p68
      %p70 = scmp.ne.s32.totalorder %s59, %s62
      %p71 = scmp.eq.s32.totalorder %s14, 3
      %p72 = por %p70, %p71
      %p73 = scmp.ne.s32.totalorder %s62, %s63
      %p74 = scmp.eq.s32.totalorder %s14, 0
      %p75 = por %p73, %p74
      %p76 = scmp.ne.s32.totalorder %s62, %s63
      %p77 = scmp.eq.s32.totalorder %s15, 3
      %p78 = por %p76, %p77
      %p80 = scmp.ne.s32.totalorder %s63, %s79
      %p81 = scmp.eq.s32.totalorder %s15, 0
      %p82 = por %p80, %p81
      %s83 = ssub.s32 %s17, %s24
      %p84 = scmp.eq.s32.totalorder %s83, 0
      %s86 = sadd.s32 %s85, 1
      %s87 = scalar_select %p84, %s85, %s86
      %p90 = pneg %p84
      %p91 = scmp.eq.s32.totalorder %s9, 3
      %p92 = por %p90, %p91
      %p93 = scmp.ne.s32.totalorder %s85, %s88
      %p94 = scmp.eq.s32.totalorder %s9, 0
      %p95 = por %p93, %p94
      %p96 = scmp.ne.s32.totalorder %s85, %s88
      %p97 = scmp.eq.s32.totalorder %s14, 3
      %p98 = por %p96, %p97
      %p99 = scmp.ne.s32.totalorder %s88, %s89
      %p100 = scmp.eq.s32.totalorder %s14, 0
      %p101 = por %p99, %p100
      %p102 = scmp.ne.s32.totalorder %s88, %s89
      %p103 = scmp.eq.s32.totalorder %s15, 3
      %p104 = por %p102, %p103
      %p106 = scmp.ne.s32.totalorder %s89, %s105
      %p107 = scmp.eq.s32.totalorder %s15, 0
      %p108 = por %p106, %p107
      %s109 = ssub.s32 %s16, %s28
      %p110 = scmp.eq.s32.totalorder %s109, 0
      %s112 = sadd.s32 %s111, 1
      %s113 = scalar_select %p110, %s111, %s112
      %p116 = pneg %p110
      %p117 = scmp.eq.s32.totalorder %s9, 3
      %p118 = por %p116, %p117
      %p119 = scmp.ne.s32.totalorder %s111, %s114
      %p120 = scmp.eq.s32.totalorder %s9, 0
      %p121 = por %p119, %p120
      %p122 = scmp.ne.s32.totalorder %s111, %s114
      %p123 = scmp.eq.s32.totalorder %s14, 3
      %p124 = por %p122, %p123
      %p125 = scmp.ne.s32.totalorder %s114, %s115
      %p126 = scmp.eq.s32.totalorder %s14, 0
      %p127 = por %p125, %p126
      %p128 = scmp.ne.s32.totalorder %s114, %s115
      %p129 = scmp.eq.s32.totalorder %s15, 3
      %p130 = por %p128, %p129
      %p132 = scmp.ne.s32.totalorder %s115, %s131
      %p133 = scmp.eq.s32.totalorder %s15, 0
      %p134 = por %p132, %p133
      %p135 = scmp.le.s32.totalorder 1, %s9
      %p136 = scmp.lt.s32.totalorder %s9, 5
      %p137 = pnand %p135, %p136
      %p138 = pneg %p137
      // Predicated region
      $region9: #{tpu_custom_call.1} parent=5 // pred_check
        _
      $region10: #{tpu_custom_call.1} parent=5 // pred_check_branch
        %140 = sbr.rel (%p137) target = $region12
      $region11: #{tpu_custom_call.1} parent=5 // pred_region
        %s141 = ssub.s32 %s9, 1
      $region12: #{tpu_custom_call.1} parent=5 // pred_fallthru
        _
      %p142 = scmp.lt.s32.totalorder %s9, 4
      // Predicated region
      $region13: #{tpu_custom_call.1} parent=5 // pred_check
        %p143 = pneg %p142
      $region14: #{tpu_custom_call.1} parent=5 // pred_check_branch
        %145 = sbr.rel (%p143) target = $region16
      $region15: #{tpu_custom_call.1} parent=5 // pred_region
        // Predicated region
        $region17: #{tpu_custom_call.1} parent=15 // pred_check
          %p146 = pneg %p43
        $region18: #{tpu_custom_call.1} parent=15 // pred_check_branch
          %148 = sbr.rel (%p146) target = $region20
        $region19: #{tpu_custom_call.1} parent=15 // pred_region
          %s149 = sand.u32 %s33, 1
          %s150 = sand.u32 %s33, 1
          %s151 = smul.addr %s150, 128
          %s152 = scalar_lea.vmem [#allocation3], %s151
          %s153 = smul.u32 16, %s16
          %s154 = smul.addr %s153, 2
          %s155 = sadd.s32 %s17, %s154
          %s156 = smul.addr %s155, 8
          %s157 = scalar_lea.vmem %s0, %s156
          // Predicated region
          $region21: #{tpu_custom_call.1} parent=19 // pred_check
            _
          $region22: #{tpu_custom_call.1} parent=19 // pred_check_branch
            %159 = sbr.rel (0) target = $region24
          $region23: #{tpu_custom_call.1} parent=19 // pred_region
            // Predicated region
            $region25: #{tpu_custom_call.1} parent=23 // pred_check
              _
            $region26: #{tpu_custom_call.1} parent=23 // pred_check_branch
              %161 = sbr.rel (0) target = $region28
            $region27: #{tpu_custom_call.1} parent=23 // pred_region
              // Predicated region
              $region40: #{tpu_custom_call.1} parent=27 // pred_check
                _
              $region41: #{tpu_custom_call.1} parent=27 // pred_check_branch
                %206 = sbr.rel (0) target = $region43
              $region42: #{tpu_custom_call.1} parent=27 // pred_region
                loop: start=0, step=1, limit=1
                $region44: #{tpu_custom_call.1} parent=42 // loop_pre_header
                  _
                $region45: #{tpu_custom_call.1} parent=42 // loop_header
                  %s208 = sphi 0, %s212
                  %p209 = scmp.ge.s32.totalorder %s208, 1
                  %s213 = sphi %s157, %s157
                  %s214 = sphi %s152, %s152
                $region46: #{tpu_custom_call.1} parent=42 // loop_header_branch
                  %211 = sbr.rel (%p209) target = $region50
                $region47: #{tpu_custom_call.1} parent=42 // loop_body
                  %v215 = vld [vmem:[%s213] sm:$0xff]
                  %216 = vst [vmem:[%s214] sm:$0xff] %v215
                  %v217 = vld [vmem:[%s213 + $0x10] sm:$0xff]
                  %218 = vst [vmem:[%s214 + $0x8] sm:$0xff] %v217
                  %v219 = vld [vmem:[%s213 + $0x20] sm:$0xff]
                  %220 = vst [vmem:[%s214 + $0x10] sm:$0xff] %v219
                  %v221 = vld [vmem:[%s213 + $0x30] sm:$0xff]
                  %222 = vst [vmem:[%s214 + $0x18] sm:$0xff] %v221
                  %v223 = vld [vmem:[%s213 + $0x40] sm:$0xff]
                  %224 = vst [vmem:[%s214 + $0x20] sm:$0xff] %v223
                  %v225 = vld [vmem:[%s213 + $0x50] sm:$0xff]
                  %226 = vst [vmem:[%s214 + $0x28] sm:$0xff] %v225
                  %v227 = vld [vmem:[%s213 + $0x60] sm:$0xff]
                  %228 = vst [vmem:[%s214 + $0x30] sm:$0xff] %v227
                  %v229 = vld [vmem:[%s213 + $0x70] sm:$0xff]
                  %230 = vst [vmem:[%s214 + $0x38] sm:$0xff] %v229
                  %v231 = vld [vmem:[%s213 + $0x80] sm:$0xff]
                  %232 = vst [vmem:[%s214 + $0x40] sm:$0xff] %v231
                  %v233 = vld [vmem:[%s213 + $0x90] sm:$0xff]
                  %234 = vst [vmem:[%s214 + $0x48] sm:$0xff] %v233
                  %v235 = vld [vmem:[%s213 + $0xa0] sm:$0xff]
                  %236 = vst [vmem:[%s214 + $0x50] sm:$0xff] %v235
                  %v237 = vld [vmem:[%s213 + $0xb0] sm:$0xff]
                  %238 = vst [vmem:[%s214 + $0x58] sm:$0xff] %v237
                  %v239 = vld [vmem:[%s213 + $0xc0] sm:$0xff]
                  %240 = vst [vmem:[%s214 + $0x60] sm:$0xff] %v239
                  %v241 = vld [vmem:[%s213 + $0xd0] sm:$0xff]
                  %242 = vst [vmem:[%s214 + $0x68] sm:$0xff] %v241
                  %v243 = vld [vmem:[%s213 + $0xe0] sm:$0xff]
                  %244 = vst [vmem:[%s214 + $0x70] sm:$0xff] %v243
                  %v245 = vld [vmem:[%s213 + $0xf0] sm:$0xff]
                  %246 = vst [vmem:[%s214 + $0x78] sm:$0xff] %v245
                $region48: #{tpu_custom_call.1} parent=42 // loop_footer
                  %s212 = sadd.s32 1, %s208
                $region49: #{tpu_custom_call.1} parent=42 // loop_footer_branch
                  %207 = sbr.rel target = $region45
                $region50: #{tpu_custom_call.1} parent=42 // loop_exit
                  _
              $region43: #{tpu_custom_call.1} parent=27 // pred_fallthru
                _
              // Predicated region
              $region51: #{tpu_custom_call.1} parent=27 // pred_check
                _
              $region52: #{tpu_custom_call.1} parent=27 // pred_check_branch
                %248 = sbr.rel target = $region54
              $region53: #{tpu_custom_call.1} parent=27 // pred_region
                _
              $region54: #{tpu_custom_call.1} parent=27 // pred_fallthru
                _
            $region28: #{tpu_custom_call.1} parent=23 // pred_fallthru
              _
            // Predicated region
            $region29: #{tpu_custom_call.1} parent=23 // pred_check
              _
            $region30: #{tpu_custom_call.1} parent=23 // pred_check_branch
              %163 = sbr.rel target = $region32
            $region31: #{tpu_custom_call.1} parent=23 // pred_region
              loop: start=0, step=1, limit=1
              $region33: #{tpu_custom_call.1} parent=31 // loop_pre_header
                _
              $region34: #{tpu_custom_call.1} parent=31 // loop_header
                %s166 = sphi 0, %s170
                %p167 = scmp.ge.s32.totalorder %s166, 1
                %s171 = sphi %s157, %s157
                %s172 = sphi %s152, %s152
              $region35: #{tpu_custom_call.1} parent=31 // loop_header_branch
                %169 = sbr.rel (%p167) target = $region39
              $region36: #{tpu_custom_call.1} parent=31 // loop_body
                %v173 = vld [vmem:[%s171] sm:$0xff]
                %174 = vst [vmem:[%s172] sm:$0xff] %v173
                %v175 = vld [vmem:[%s171 + $0x10] sm:$0xff]
                %176 = vst [vmem:[%s172 + $0x8] sm:$0xff] %v175
                %v177 = vld [vmem:[%s171 + $0x20] sm:$0xff]
                %178 = vst [vmem:[%s172 + $0x10] sm:$0xff] %v177
                %v179 = vld [vmem:[%s171 + $0x30] sm:$0xff]
                %180 = vst [vmem:[%s172 + $0x18] sm:$0xff] %v179
                %v181 = vld [vmem:[%s171 + $0x40] sm:$0xff]
                %182 = vst [vmem:[%s172 + $0x20] sm:$0xff] %v181
                %v183 = vld [vmem:[%s171 + $0x50] sm:$0xff]
                %184 = vst [vmem:[%s172 + $0x28] sm:$0xff] %v183
                %v185 = vld [vmem:[%s171 + $0x60] sm:$0xff]
                %186 = vst [vmem:[%s172 + $0x30] sm:$0xff] %v185
                %v187 = vld [vmem:[%s171 + $0x70] sm:$0xff]
                %188 = vst [vmem:[%s172 + $0x38] sm:$0xff] %v187
                %v189 = vld [vmem:[%s171 + $0x80] sm:$0xff]
                %190 = vst [vmem:[%s172 + $0x40] sm:$0xff] %v189
                %v191 = vld [vmem:[%s171 + $0x90] sm:$0xff]
                %192 = vst [vmem:[%s172 + $0x48] sm:$0xff] %v191
                %v193 = vld [vmem:[%s171 + $0xa0] sm:$0xff]
                %194 = vst [vmem:[%s172 + $0x50] sm:$0xff] %v193
                %v195 = vld [vmem:[%s171 + $0xb0] sm:$0xff]
                %196 = vst [vmem:[%s172 + $0x58] sm:$0xff] %v195
                %v197 = vld [vmem:[%s171 + $0xc0] sm:$0xff]
                %198 = vst [vmem:[%s172 + $0x60] sm:$0xff] %v197
                %v199 = vld [vmem:[%s171 + $0xd0] sm:$0xff]
                %200 = vst [vmem:[%s172 + $0x68] sm:$0xff] %v199
                %v201 = vld [vmem:[%s171 + $0xe0] sm:$0xff]
                %202 = vst [vmem:[%s172 + $0x70] sm:$0xff] %v201
                %v203 = vld [vmem:[%s171 + $0xf0] sm:$0xff]
                %204 = vst [vmem:[%s172 + $0x78] sm:$0xff] %v203
              $region37: #{tpu_custom_call.1} parent=31 // loop_footer
                %s170 = sadd.s32 1, %s166
              $region38: #{tpu_custom_call.1} parent=31 // loop_footer_branch
                %165 = sbr.rel target = $region34
              $region39: #{tpu_custom_call.1} parent=31 // loop_exit
                _
            $region32: #{tpu_custom_call.1} parent=23 // pred_fallthru
              _
          $region24: #{tpu_custom_call.1} parent=19 // pred_fallthru
            _
          %249 = vnop
        $region20: #{tpu_custom_call.1} parent=15 // pred_fallthru
          _
        // Predicated region
        $region55: #{tpu_custom_call.1} parent=15 // pred_check
          %p250 = pneg %p69
        $region56: #{tpu_custom_call.1} parent=15 // pred_check_branch
          %252 = sbr.rel (%p250) target = $region58
        $region57: #{tpu_custom_call.1} parent=15 // pred_region
          %s253 = smul.u32 16, %s16
          %p254 = scmp.lt.s32.totalorder %s253, 31
          %s255 = scalar_select %p254, %s253, 31
          %s256 = smul.addr %s255, 8
          %s257 = scalar_lea.vmem %s1, %s256
          %s258 = smul.u32 16, %s16
        $region58: #{tpu_custom_call.1} parent=15 // pred_fallthru
          _
        // Predicated region
        $region59: #{tpu_custom_call.1} parent=15 // pred_check
          %p259 = pneg %p95
        $region60: #{tpu_custom_call.1} parent=15 // pred_check_branch
          %261 = sbr.rel (%p259) target = $region62
        $region61: #{tpu_custom_call.1} parent=15 // pred_region
          %s262 = smul.u32 16, %s17
          %p263 = scmp.lt.s32.totalorder %s262, 31
          %s264 = scalar_select %p263, %s262, 31
          %s265 = smul.addr %s264, 8
          %s266 = scalar_lea.vmem %s2, %s265
          %s267 = smul.u32 16, %s17
        $region62: #{tpu_custom_call.1} parent=15 // pred_fallthru
          _
      $region16: #{tpu_custom_call.1} parent=5 // pred_fallthru
        _
      %p268 = scmp.le.s32.totalorder 1, %s9
      %p269 = scmp.lt.s32.totalorder %s9, 5
      %p270 = pnand %p268, %p269
      %p271 = pneg %p270
      // Predicated region
      $region63: #{tpu_custom_call.1} parent=5 // pred_check
        _
      $region64: #{tpu_custom_call.1} parent=5 // pred_check_branch
        %273 = sbr.rel (%p270) target = $region66
      $region65: #{tpu_custom_call.1} parent=5 // pred_region
        %s274 = ssub.s32 %s9, 1
        %s275 = sand.u32 %s36, 1
        %s276 = sand.u32 %s36, 1
        %s277 = smul.addr %s276, 128
        %s278 = scalar_lea.vmem [#allocation3], %s277
        // Predicated region
        $region67: #{tpu_custom_call.1} parent=65 // pred_check
          %p279 = pneg %p49
        $region68: #{tpu_custom_call.1} parent=65 // pred_check_branch
          %281 = sbr.rel (%p279) target = $region70
        $region69: #{tpu_custom_call.1} parent=65 // pred_region
          _
        $region70: #{tpu_custom_call.1} parent=65 // pred_fallthru
          _
        %s282 = sand.u32 %s36, 1
        %s283 = sand.u32 %s36, 1
        %s284 = smul.addr %s283, 128
        %s285 = scalar_lea.vmem [#allocation3], %s284
        %p286 = pneg %p49
        %p287 = pneg %p46
        %s288 = smul.u32 16, %s18
        %p289 = scmp.lt.s32.totalorder %s288, 31
        %s290 = scalar_select %p289, %s288, 31
        %s291 = smul.addr %s290, 8
        %s292 = scalar_lea.vmem %s1, %s291
        %p293 = pneg %p75
        %p294 = pneg %p72
        %s295 = smul.u32 16, %s19
        %p296 = scmp.lt.s32.totalorder %s295, 31
        %s297 = scalar_select %p296, %s295, 31
        %s298 = smul.addr %s297, 8
        %s299 = scalar_lea.vmem %s2, %s298
        %p300 = pneg %p101
        %p301 = pneg %p98
        %p302 = pneg %p127
        %p303 = pneg %p124
        %p304 = scmp.lt.s32.totalorder %s18, 1
        %s305 = scalar_select %p304, %s18, 1
        %s306 = scalar_lea.vmem %s3, %s305
        %s307 = smul.u32 16, %s18
        %s308 = smul.u32 16, %s18
        %p309 = scmp.lt.s32.totalorder %s308, 31
        %s310 = scalar_select %p309, %s308, 31
        %s311 = smul.addr %s310, 8
        %s312 = scalar_lea.vmem %s1, %s311
        %s313 = smul.u32 16, %s18
        %s314 = smul.u32 16, %s19
        %p315 = scmp.lt.s32.totalorder %s314, 31
        %s316 = scalar_select %p315, %s314, 31
        %s317 = smul.addr %s316, 8
        %s318 = scalar_lea.vmem %s2, %s317
        %s319 = smul.u32 16, %s19
        %p320 = scmp.lt.s32.totalorder %s18, 1
        %s321 = scalar_select %p320, %s18, 1
        %s322 = scalar_lea.vmem %s3, %s321
        %p323 = scmp.eq.s32.totalorder %s19, 0
        // Predicated region
        $region71: #{tpu_custom_call.1} parent=65 // pred_check
          %p324 = pneg %p323
        $region72: #{tpu_custom_call.1} parent=65 // pred_check_branch
          %326 = sbr.rel (%p324) target = $region74
        $region73: #{tpu_custom_call.1} parent=65 // pred_region
          %vm327 = vcmask 146432
          %328 = vst.msk [vmem:[#allocation2] sm:$0xff] %vm327, 0.0
          %329 = vst.msk [vmem:[#allocation2 + $0x8] sm:$0xff] %vm327, 0.0
          %330 = vst.msk [vmem:[#allocation2 + $0x10] sm:$0xff] %vm327, 0.0
          %331 = vst.msk [vmem:[#allocation2 + $0x18] sm:$0xff] %vm327, 0.0
          %332 = vst.msk [vmem:[#allocation2 + $0x20] sm:$0xff] %vm327, 0.0
          %333 = vst.msk [vmem:[#allocation2 + $0x28] sm:$0xff] %vm327, 0.0
          %334 = vst.msk [vmem:[#allocation2 + $0x30] sm:$0xff] %vm327, 0.0
          %335 = vst.msk [vmem:[#allocation2 + $0x38] sm:$0xff] %vm327, 0.0
          %336 = vst.msk [vmem:[#allocation2 + $0x40] sm:$0xff] %vm327, 0.0
          %337 = vst.msk [vmem:[#allocation2 + $0x48] sm:$0xff] %vm327, 0.0
          %338 = vst.msk [vmem:[#allocation2 + $0x50] sm:$0xff] %vm327, 0.0
          %339 = vst.msk [vmem:[#allocation2 + $0x58] sm:$0xff] %vm327, 0.0
          %340 = vst.msk [vmem:[#allocation2 + $0x60] sm:$0xff] %vm327, 0.0
          %341 = vst.msk [vmem:[#allocation2 + $0x68] sm:$0xff] %vm327, 0.0
          %342 = vst.msk [vmem:[#allocation2 + $0x70] sm:$0xff] %vm327, 0.0
          %343 = vst.msk [vmem:[#allocation2 + $0x78] sm:$0xff] %vm327, 0.0
        $region74: #{tpu_custom_call.1} parent=65 // pred_fallthru
          _
        %v344 = vld [vmem:[#allocation2] sm:$0xff]
        %v345 = vld [vmem:[#allocation2 + $0x8] sm:$0xff]
        %v346 = vld [vmem:[#allocation2 + $0x10] sm:$0xff]
        %v347 = vld [vmem:[#allocation2 + $0x18] sm:$0xff]
        %v348 = vld [vmem:[#allocation2 + $0x20] sm:$0xff]
        %v349 = vld [vmem:[#allocation2 + $0x28] sm:$0xff]
        %v350 = vld [vmem:[#allocation2 + $0x30] sm:$0xff]
        %v351 = vld [vmem:[#allocation2 + $0x38] sm:$0xff]
        %v352 = vld [vmem:[#allocation2 + $0x40] sm:$0xff]
        %v353 = vld [vmem:[#allocation2 + $0x48] sm:$0xff]
        %v354 = vld [vmem:[#allocation2 + $0x50] sm:$0xff]
        %v355 = vld [vmem:[#allocation2 + $0x58] sm:$0xff]
        %v356 = vld [vmem:[#allocation2 + $0x60] sm:$0xff]
        %v357 = vld [vmem:[#allocation2 + $0x68] sm:$0xff]
        %v358 = vld [vmem:[#allocation2 + $0x70] sm:$0xff]
        %v359 = vld [vmem:[#allocation2 + $0x78] sm:$0xff]
        %v360 = vld [vmem:[%s278] sm:$0xff]
        %v361 = vld [vmem:[%s278 + $0x8] sm:$0xff]
        %v362 = vld [vmem:[%s278 + $0x10] sm:$0xff]
        %v363 = vld [vmem:[%s278 + $0x18] sm:$0xff]
        %v364 = vld [vmem:[%s278 + $0x20] sm:$0xff]
        %v365 = vld [vmem:[%s278 + $0x28] sm:$0xff]
        %v366 = vld [vmem:[%s278 + $0x30] sm:$0xff]
        %v367 = vld [vmem:[%s278 + $0x38] sm:$0xff]
        %v368 = vld [vmem:[%s278 + $0x40] sm:$0xff]
        %v369 = vld [vmem:[%s278 + $0x48] sm:$0xff]
        %v370 = vld [vmem:[%s278 + $0x50] sm:$0xff]
        %v371 = vld [vmem:[%s278 + $0x58] sm:$0xff]
        %v372 = vld [vmem:[%s278 + $0x60] sm:$0xff]
        %v373 = vld [vmem:[%s278 + $0x68] sm:$0xff]
        %v374 = vld [vmem:[%s278 + $0x70] sm:$0xff]
        %v375 = vld [vmem:[%s278 + $0x78] sm:$0xff]
        %v376 = vld [vmem:[%s318] sm:$0xff]
        %v377 = vld [vmem:[%s318 + $0x8] sm:$0xff]
        %v378 = vld [vmem:[%s318 + $0x10] sm:$0xff]
        %v379 = vld [vmem:[%s318 + $0x18] sm:$0xff]
        %v380 = vld [vmem:[%s318 + $0x20] sm:$0xff]
        %v381 = vld [vmem:[%s318 + $0x28] sm:$0xff]
        %v382 = vld [vmem:[%s318 + $0x30] sm:$0xff]
        %v383 = vld [vmem:[%s318 + $0x38] sm:$0xff]
        %v384 = vld [vmem:[%s318 + $0x40] sm:$0xff]
        %v385 = vld [vmem:[%s318 + $0x48] sm:$0xff]
        %v386 = vld [vmem:[%s318 + $0x50] sm:$0xff]
        %v387 = vld [vmem:[%s318 + $0x58] sm:$0xff]
        %v388 = vld [vmem:[%s318 + $0x60] sm:$0xff]
        %v389 = vld [vmem:[%s318 + $0x68] sm:$0xff]
        %v390 = vld [vmem:[%s318 + $0x70] sm:$0xff]
        %v391 = vld [vmem:[%s318 + $0x78] sm:$0xff]
        %392 = vmatprep.subr.mxu0 0.0
        %393 = vmatpush1.msra.mxu0 %v376
        %394 = vmatprep.subr.mxu0 0.0
        %395 = vmatpush1.msra.mxu0 %v377
        %396 = vmatprep.subr.mxu0 0.0
        %397 = vmatpush1.msra.mxu0 %v378
        %398 = vmatprep.subr.mxu0 0.0
        %399 = vmatpush1.msra.mxu0 %v379
        %400 = vmatprep.subr.mxu0 0.0
        %401 = vmatpush1.msra.mxu0 %v380
        %402 = vmatprep.subr.mxu0 0.0
        %403 = vmatpush1.msra.mxu0 %v381
        %404 = vmatprep.subr.mxu0 0.0
        %405 = vmatpush1.msra.mxu0 %v382
        %406 = vmatprep.subr.mxu0 0.0
        %407 = vmatpush1.msra.mxu0 %v383
        %408 = vmatprep.subr.mxu0 0.0
        %409 = vmatpush1.msra.mxu0 %v384
        %410 = vmatprep.subr.mxu0 0.0
        %411 = vmatpush1.msra.mxu0 %v385
        %412 = vmatprep.subr.mxu0 0.0
        %413 = vmatpush1.msra.mxu0 %v386
        %414 = vmatprep.subr.mxu0 0.0
        %415 = vmatpush1.msra.mxu0 %v387
        %416 = vmatprep.subr.mxu0 0.0
        %417 = vmatpush1.msra.mxu0 %v388
        %418 = vmatprep.subr.mxu0 0.0
        %419 = vmatpush1.msra.mxu0 %v389
        %420 = vmatprep.subr.mxu0 0.0
        %421 = vmatpush1.msra.mxu0 %v390
        %422 = vmatprep.subr.mxu0 0.0
        %423 = vmatpush1.msra.mxu0 %v391
        %424 = vmatprep.subr.mxu0 0.0
        %425 = vmatpush1.msra.mxu0 0.0
        %426 = vmatprep.subr.mxu0 0.0
        %427 = vmatpush1.msra.mxu0 0.0
        %428 = vmatprep.subr.mxu0 0.0
        %429 = vmatpush1.msra.mxu0 0.0
        %430 = vmatprep.subr.mxu0 0.0
        %431 = vmatpush1.msra.mxu0 0.0
        %432 = vmatprep.subr.mxu0 0.0
        %433 = vmatpush1.msra.mxu0 0.0
        %434 = vmatprep.subr.mxu0 0.0
        %435 = vmatpush1.msra.mxu0 0.0
        %436 = vmatprep.subr.mxu0 0.0
        %437 = vmatpush1.msra.mxu0 0.0
        %438 = vmatprep.subr.mxu0 0.0
        %439 = vmatpush1.msra.mxu0 0.0
        %440 = vmatprep.subr.mxu0 0.0
        %441 = vmatpush1.msra.mxu0 0.0
        %442 = vmatprep.subr.mxu0 0.0
        %443 = vmatpush1.msra.mxu0 0.0
        %444 = vmatprep.subr.mxu0 0.0
        %445 = vmatpush1.msra.mxu0 0.0
        %446 = vmatprep.subr.mxu0 0.0
        %447 = vmatpush1.msra.mxu0 0.0
        %448 = vmatprep.subr.mxu0 0.0
        %449 = vmatpush1.msra.mxu0 0.0
        %450 = vmatprep.subr.mxu0 0.0
        %451 = vmatpush1.msra.mxu0 0.0
        %452 = vmatprep.subr.mxu0 0.0
        %453 = vmatpush1.msra.mxu0 0.0
        %454 = vmatprep.subr.mxu0 0.0
        %455 = vmatpush1.msra.mxu0 0.0
        %456 = vmatprep.mubr.f32.mxu0 0.0
        %457 = vmatmul.mubr.f32.gmra.mrb[0].mxu0 %v360
        %v458 = vpop.f32.mrb[0].mxu0
        %v459 = vadd.f32 0.0, %v458
        %v460 = vpop.f32.mrb[0].mxu0
        %461 = vmatprep.mubr.f32.mxu0 0.0
        %462 = vmatmul.mubr.f32.gmra.mrb[0].mxu0 %v361
        %v463 = vpop.f32.mrb[0].mxu0
        %v464 = vadd.f32 0.0, %v463
        %v465 = vpop.f32.mrb[0].mxu0
        %466 = vmatprep.mubr.f32.mxu0 0.0
        %467 = vmatmul.mubr.f32.gmra.mrb[0].mxu0 %v362
        %v468 = vpop.f32.mrb[0].mxu0
        %v469 = vadd.f32 0.0, %v468
        %v470 = vpop.f32.mrb[0].mxu0
        %471 = vmatprep.mubr.f32.mxu0 0.0
        %472 = vmatmul.mubr.f32.gmra.mrb[0].mxu0 %v363
        %v473 = vpop.f32.mrb[0].mxu0
        %v474 = vadd.f32 0.0, %v473
        %v475 = vpop.f32.mrb[0].mxu0
        %476 = vmatprep.mubr.f32.mxu0 0.0
        %477 = vmatmul.mubr.f32.gmra.mrb[0].mxu0 %v364
        %v478 = vpop.f32.mrb[0].mxu0
        %v479 = vadd.f32 0.0, %v478
        %v480 = vpop.f32.mrb[0].mxu0
        %481 = vmatprep.mubr.f32.mxu0 0.0
        %482 = vmatmul.mubr.f32.gmra.mrb[0].mxu0 %v365
        %v483 = vpop.f32.mrb[0].mxu0
        %v484 = vadd.f32 0.0, %v483
        %v485 = vpop.f32.mrb[0].mxu0
        %486 = vmatprep.mubr.f32.mxu0 0.0
        %487 = vmatmul.mubr.f32.gmra.mrb[0].mxu0 %v366
        %v488 = vpop.f32.mrb[0].mxu0
        %v489 = vadd.f32 0.0, %v488
        %v490 = vpop.f32.mrb[0].mxu0
        %491 = vmatprep.mubr.f32.mxu0 0.0
        %492 = vmatmul.mubr.f32.gmra.mrb[0].mxu0 %v367
        %v493 = vpop.f32.mrb[0].mxu0
        %v494 = vadd.f32 0.0, %v493
        %v495 = vpop.f32.mrb[0].mxu0
        %496 = vmatprep.mubr.f32.mxu0 0.0
        %497 = vmatmul.mubr.f32.gmra.mrb[0].mxu0 %v368
        %v498 = vpop.f32.mrb[0].mxu0
        %v499 = vadd.f32 0.0, %v498
        %v500 = vpop.f32.mrb[0].mxu0
        %501 = vmatprep.mubr.f32.mxu0 0.0
        %502 = vmatmul.mubr.f32.gmra.mrb[0].mxu0 %v369
        %v503 = vpop.f32.mrb[0].mxu0
        %v504 = vadd.f32 0.0, %v503
        %v505 = vpop.f32.mrb[0].mxu0
        %506 = vmatprep.mubr.f32.mxu0 0.0
        %507 = vmatmul.mubr.f32.gmra.mrb[0].mxu0 %v370
        %v508 = vpop.f32.mrb[0].mxu0
        %v509 = vadd.f32 0.0, %v508
        %v510 = vpop.f32.mrb[0].mxu0
        %511 = vmatprep.mubr.f32.mxu0 0.0
        %512 = vmatmul.mubr.f32.gmra.mrb[0].mxu0 %v371
        %v513 = vpop.f32.mrb[0].mxu0
        %v514 = vadd.f32 0.0, %v513
        %v515 = vpop.f32.mrb[0].mxu0
        %516 = vmatprep.mubr.f32.mxu0 0.0
        %517 = vmatmul.mubr.f32.gmra.mrb[0].mxu0 %v372
        %v518 = vpop.f32.mrb[0].mxu0
        %v519 = vadd.f32 0.0, %v518
        %v520 = vpop.f32.mrb[0].mxu0
        %521 = vmatprep.mubr.f32.mxu0 0.0
        %522 = vmatmul.mubr.f32.gmra.mrb[0].mxu0 %v373
        %v523 = vpop.f32.mrb[0].mxu0
        %v524 = vadd.f32 0.0, %v523
        %v525 = vpop.f32.mrb[0].mxu0
        %526 = vmatprep.mubr.f32.mxu0 0.0
        %527 = vmatmul.mubr.f32.gmra.mrb[0].mxu0 %v374
        %v528 = vpop.f32.mrb[0].mxu0
        %v529 = vadd.f32 0.0, %v528
        %v530 = vpop.f32.mrb[0].mxu0
        %531 = vmatprep.mubr.f32.mxu0 0.0
        %532 = vmatmul.mubr.f32.gmra.mrb[0].mxu0 %v375
        %v533 = vpop.f32.mrb[0].mxu0
        %v534 = vadd.f32 0.0, %v533
        %v535 = vpop.f32.mrb[0].mxu0
        %536 = vdwg.mxu0
        %v537 = vadd.f32 %v344, %v459
        %v538 = vadd.f32 %v345, %v464
        %v539 = vadd.f32 %v346, %v469
        %v540 = vadd.f32 %v347, %v474
        %v541 = vadd.f32 %v348, %v479
        %v542 = vadd.f32 %v349, %v484
        %v543 = vadd.f32 %v350, %v489
        %v544 = vadd.f32 %v351, %v494
        %v545 = vadd.f32 %v352, %v499
        %v546 = vadd.f32 %v353, %v504
        %v547 = vadd.f32 %v354, %v509
        %v548 = vadd.f32 %v355, %v514
        %v549 = vadd.f32 %v356, %v519
        %v550 = vadd.f32 %v357, %v524
        %v551 = vadd.f32 %v358, %v529
        %v552 = vadd.f32 %v359, %v534
        %vm553 = vcmask 146432
        %554 = vst.msk [vmem:[#allocation2] sm:$0xff] %vm553, %v537
        %555 = vst.msk [vmem:[#allocation2 + $0x8] sm:$0xff] %vm553, %v538
        %556 = vst.msk [vmem:[#allocation2 + $0x10] sm:$0xff] %vm553, %v539
        %557 = vst.msk [vmem:[#allocation2 + $0x18] sm:$0xff] %vm553, %v540
        %558 = vst.msk [vmem:[#allocation2 + $0x20] sm:$0xff] %vm553, %v541
        %559 = vst.msk [vmem:[#allocation2 + $0x28] sm:$0xff] %vm553, %v542
        %560 = vst.msk [vmem:[#allocation2 + $0x30] sm:$0xff] %vm553, %v543
        %561 = vst.msk [vmem:[#allocation2 + $0x38] sm:$0xff] %vm553, %v544
        %562 = vst.msk [vmem:[#allocation2 + $0x40] sm:$0xff] %vm553, %v545
        %563 = vst.msk [vmem:[#allocation2 + $0x48] sm:$0xff] %vm553, %v546
        %564 = vst.msk [vmem:[#allocation2 + $0x50] sm:$0xff] %vm553, %v547
        %565 = vst.msk [vmem:[#allocation2 + $0x58] sm:$0xff] %vm553, %v548
        %566 = vst.msk [vmem:[#allocation2 + $0x60] sm:$0xff] %vm553, %v549
        %567 = vst.msk [vmem:[#allocation2 + $0x68] sm:$0xff] %vm553, %v550
        %568 = vst.msk [vmem:[#allocation2 + $0x70] sm:$0xff] %vm553, %v551
        %569 = vst.msk [vmem:[#allocation2 + $0x78] sm:$0xff] %vm553, %v552
        %p570 = scmp.eq.s32.totalorder %s19, 1
        // Predicated region
        $region75: #{tpu_custom_call.1} parent=65 // pred_check
          %p571 = pneg %p570
        $region76: #{tpu_custom_call.1} parent=65 // pred_check_branch
          %573 = sbr.rel (%p571) target = $region78
        $region77: #{tpu_custom_call.1} parent=65 // pred_region
          %v574 = vld [vmem:[%s312] sm:$0xff]
          %v575 = vld [vmem:[%s312 + $0x8] sm:$0xff]
          %v576 = vld [vmem:[%s312 + $0x10] sm:$0xff]
          %v577 = vld [vmem:[%s312 + $0x18] sm:$0xff]
          %v578 = vld [vmem:[%s312 + $0x20] sm:$0xff]
          %v579 = vld [vmem:[%s312 + $0x28] sm:$0xff]
          %v580 = vld [vmem:[%s312 + $0x30] sm:$0xff]
          %v581 = vld [vmem:[%s312 + $0x38] sm:$0xff]
          %v582 = vld [vmem:[%s312 + $0x40] sm:$0xff]
          %v583 = vld [vmem:[%s312 + $0x48] sm:$0xff]
          %v584 = vld [vmem:[%s312 + $0x50] sm:$0xff]
          %v585 = vld [vmem:[%s312 + $0x58] sm:$0xff]
          %v586 = vld [vmem:[%s312 + $0x60] sm:$0xff]
          %v587 = vld [vmem:[%s312 + $0x68] sm:$0xff]
          %v588 = vld [vmem:[%s312 + $0x70] sm:$0xff]
          %v589 = vld [vmem:[%s312 + $0x78] sm:$0xff]
          %v590 = vld [vmem:[#allocation2] sm:$0xff]
          %v591 = vld [vmem:[#allocation2 + $0x8] sm:$0xff]
          %v592 = vld [vmem:[#allocation2 + $0x10] sm:$0xff]
          %v593 = vld [vmem:[#allocation2 + $0x18] sm:$0xff]
          %v594 = vld [vmem:[#allocation2 + $0x20] sm:$0xff]
          %v595 = vld [vmem:[#allocation2 + $0x28] sm:$0xff]
          %v596 = vld [vmem:[#allocation2 + $0x30] sm:$0xff]
          %v597 = vld [vmem:[#allocation2 + $0x38] sm:$0xff]
          %v598 = vld [vmem:[#allocation2 + $0x40] sm:$0xff]
          %v599 = vld [vmem:[#allocation2 + $0x48] sm:$0xff]
          %v600 = vld [vmem:[#allocation2 + $0x50] sm:$0xff]
          %v601 = vld [vmem:[#allocation2 + $0x58] sm:$0xff]
          %v602 = vld [vmem:[#allocation2 + $0x60] sm:$0xff]
          %v603 = vld [vmem:[#allocation2 + $0x68] sm:$0xff]
          %v604 = vld [vmem:[#allocation2 + $0x70] sm:$0xff]
          %v605 = vld [vmem:[#allocation2 + $0x78] sm:$0xff]
          %v606 = vmul.f32 %v574, %v590
          %v607 = vmul.f32 %v575, %v591
          %v608 = vmul.f32 %v576, %v592
          %v609 = vmul.f32 %v577, %v593
          %v610 = vmul.f32 %v578, %v594
          %v611 = vmul.f32 %v579, %v595
          %v612 = vmul.f32 %v580, %v596
          %v613 = vmul.f32 %v581, %v597
          %v614 = vmul.f32 %v582, %v598
          %v615 = vmul.f32 %v583, %v599
          %v616 = vmul.f32 %v584, %v600
          %v617 = vmul.f32 %v585, %v601
          %v618 = vmul.f32 %v586, %v602
          %v619 = vmul.f32 %v587, %v603
          %v620 = vmul.f32 %v588, %v604
          %v621 = vmul.f32 %v589, %v605
          %v622 = vsel %vm553, %v606, 0.0
          %v623 = vsel %vm553, %v607, 0.0
          %v624 = vadd.f32 %v622, %v623
          %v625 = vsel %vm553, %v608, 0.0
          %v626 = vadd.f32 %v624, %v625
          %v627 = vsel %vm553, %v609, 0.0
          %v628 = vadd.f32 %v626, %v627
          %v629 = vsel %vm553, %v610, 0.0
          %v630 = vadd.f32 %v628, %v629
          %v631 = vsel %vm553, %v611, 0.0
          %v632 = vadd.f32 %v630, %v631
          %v633 = vsel %vm553, %v612, 0.0
          %v634 = vadd.f32 %v632, %v633
          %v635 = vsel %vm553, %v613, 0.0
          %v636 = vadd.f32 %v634, %v635
          %v637 = vsel %vm553, %v614, 0.0
          %v638 = vadd.f32 %v636, %v637
          %v639 = vsel %vm553, %v615, 0.0
          %v640 = vadd.f32 %v638, %v639
          %v641 = vsel %vm553, %v616, 0.0
          %v642 = vadd.f32 %v640, %v641
          %v643 = vsel %vm553, %v617, 0.0
          %v644 = vadd.f32 %v642, %v643
          %v645 = vsel %vm553, %v618, 0.0
          %v646 = vadd.f32 %v644, %v645
          %v647 = vsel %vm553, %v619, 0.0
          %v648 = vadd.f32 %v646, %v647
          %v649 = vsel %vm553, %v620, 0.0
          %v650 = vadd.f32 %v648, %v649
          %v651 = vsel %vm553, %v621, 0.0
          %v652 = vadd.f32 %v650, %v651
          %653 = vadd.xlane.f32.xlu0 %v652
          %v654 = vpop.xlane.xlu0 %653
          %v655 = vrot.slane %v654, 4
          %v656 = vadd.f32 %v654, %v655
          %v657 = vrot.slane %v656, 2
          %v658 = vadd.f32 %v656, %v657
          %v659 = vrot.slane %v658, 1
          %v660 = vadd.f32 %v658, %v659
          %s661 = vtos %v660
          %v662 = vstv %s661
          %vm663 = vcmask 0
          %664 = vst.msk [vmem:[%s322] sm:$0x1] %vm663, %v662
        $region78: #{tpu_custom_call.1} parent=65 // pred_fallthru
          _
        %p665 = scmp.lt.s32.totalorder %s18, 1
        %s666 = scalar_select %p665, %s18, 1
        %s667 = scalar_lea.vmem %s3, %s666
        // Predicated region
        $region79: #{tpu_custom_call.1} parent=65 // pred_check
          %p668 = pneg %p124
        $region80: #{tpu_custom_call.1} parent=65 // pred_check_branch
          %670 = sbr.rel (%p668) target = $region82
        $region81: #{tpu_custom_call.1} parent=65 // pred_region
          _
        $region82: #{tpu_custom_call.1} parent=65 // pred_fallthru
          _
      $region66: #{tpu_custom_call.1} parent=5 // pred_fallthru
        _
      %p671 = scmp.le.s32.totalorder 2, %s9
      // Predicated region
      $region83: #{tpu_custom_call.1} parent=5 // pred_check
        %p672 = pneg %p671
      $region84: #{tpu_custom_call.1} parent=5 // pred_check_branch
        %674 = sbr.rel (%p672) target = $region86
      $region85: #{tpu_custom_call.1} parent=5 // pred_region
        %s675 = ssub.s32 %s9, 2
        // Predicated region
        $region87: #{tpu_custom_call.1} parent=85 // pred_check
          %p676 = pneg %p130
        $region88: #{tpu_custom_call.1} parent=85 // pred_check_branch
          %678 = sbr.rel (%p676) target = $region90
        $region89: #{tpu_custom_call.1} parent=85 // pred_region
          %p679 = scmp.lt.s32.totalorder %s20, 1
          %s680 = scalar_select %p679, %s20, 1
          %s681 = scalar_lea.vmem %s3, %s680
        $region90: #{tpu_custom_call.1} parent=85 // pred_fallthru
          _
      $region86: #{tpu_custom_call.1} parent=5 // pred_fallthru
        _
    $region6: #{tpu_custom_call.1} parent=1 // loop_footer
      %s13 = sadd.s32 1, %s9
    $region7: #{tpu_custom_call.1} parent=1 // loop_footer_branch
      %8 = sbr.rel target = $region3
    $region8: #{tpu_custom_call.1} parent=1 // loop_exit
      _

</llo_original>
